<compile_context>
chip_gen: v5e
topology: v5e:2x2
jax: 0.10.0
libtpu: 0.0.40
codegen_flags: <defaults>
</compile_context>

<pallas_src>
import jax
import jax.numpy as jnp
from jax import lax
from jax.experimental import pallas as pl
from jax.experimental.pallas import tpu as pltpu

D_IN, D_H1, D_H2, D_OUT = 20, 128, 64, 1
BN_EPS = 1e-5


def similarity_nn_kernel(
    x_ref,             # (TB, 20)   input tile, natural layout (batch on sublanes)
    w1_ref, b1_ref,    # (128, 20), (128, 1)
    w2_ref, b2_ref,    # (64, 128), (64, 1)    BN1 folded in
    w3_ref, b3_ref,    # (1, 64),   (1, 1)     BN2 folded in
    o_ref,             # (1, 1, TB) lane-dense output slab
):
    x = x_ref[...]

    # Linear(20,128) + ReLU.  Contract w1's in-dim with x's feature dim so the
    # activation comes out batch-on-lane (128, TB); any transpose Mosaic inserts is
    # a cheap in-VMEM XLU pass, not an HBM round trip.
    h1 = lax.dot_general(w1_ref[...], x, (((1,), (1,)), ((), ())),
                         preferred_element_type=jnp.float32)
    h1 = jnp.maximum(h1 + b1_ref[...], 0.0)                              # (128, TB) f32

    # Linear(128,64) + ReLU   (BatchNorm1d(128) folded into w2/b2; Dropout = id in eval)
    h2 = jnp.dot(w2_ref[...], h1.astype(w2_ref.dtype),
                 preferred_element_type=jnp.float32)
    h2 = jnp.maximum(h2 + b2_ref[...], 0.0)                              # (64, TB) f32

    # Linear(64,1) on the MXU (w3 held as (1,64)); BatchNorm1d(64) folded in.
    logits = jnp.dot(w3_ref[...], h2.astype(w3_ref.dtype),
                     preferred_element_type=jnp.float32) + b3_ref[...]   # (1, TB)

    # Numerically-stable sigmoid: exp() only ever sees a non-positive argument.
    z = jnp.exp(-jnp.abs(logits))
    inv = 1.0 / (1.0 + z)
    o_ref[...] = jnp.where(logits >= 0.0, inv, z * inv)[None]            # (1, 1, TB)


def _round_up(v, m):
    return -(-v // m) * m


def _choose_tile_b(batch, *, align=256, max_tile=8192, min_steps=4):
    """256-aligned batch tile: aim for >= min_steps grid steps (keeps both v7x
    TensorCores busy with >= 2 steps each so they can double-buffer their x DMAs),
    capped at 8192 (~1 KB VMEM per batch element -> ~8 MiB, comfortably under
    v5e's 16 MiB scoped default and v7x's 64 MiB/TC)."""
    tile = _round_up(max(1, -(-batch // min_steps)), align)
    return int(min(max_tile, max(align, tile)))


def fold_params(params, compute_dtype=jnp.float32):
    """Fold eval-mode BatchNorm1d affines into the *next* Linear layer and reshape
    for the kernel.  Call ONCE (outside the per-batch path) and reuse."""
    hp = lax.Precision.HIGHEST
    s1 = params["bn1_gamma"] / jnp.sqrt(params["bn1_var"] + BN_EPS)
    t1 = params["bn1_beta"] - params["bn1_mean"] * s1
    s2 = params["bn2_gamma"] / jnp.sqrt(params["bn2_var"] + BN_EPS)
    t2 = params["bn2_beta"] - params["bn2_mean"] * s2

    w2 = params["w2"] * s1[None, :]                                      # (64, 128)
    b2 = jnp.dot(params["w2"], t1, precision=hp) + params["b2"]
    w3 = params["w3"] * s2[None, :]                                      # (1, 64)
    b3 = jnp.dot(params["w3"], t2, precision=hp) + params["b3"]

    cd = compute_dtype
    return {
        "w1": params["w1"].astype(cd),                                   # (128, 20)
        "b1": params["b1"].reshape(D_H1, 1).astype(jnp.float32),
        "w2": w2.astype(cd),                                             # (64, 128)
        "b2": b2.reshape(D_H2, 1).astype(jnp.float32),
        "w3": w3.astype(cd),                                             # (1, 64)
        "b3": b3.reshape(D_OUT, 1).astype(jnp.float32),
    }


def similarity_nn_forward(x, folded, *, tile_b=None, compute_dtype=jnp.float32):
    """x: (B, 20). folded: output of fold_params. Returns (B, 1) float32."""
    B = x.shape[0]
    if tile_b is None:
        tile_b = _choose_tile_b(B)
    assert tile_b % 128 == 0, "tile_b must be a multiple of 128 (256 preferred on v6e/v7x)"

    num_tiles = int(pl.cdiv(B, tile_b))
    B_pad = num_tiles * tile_b
    x = x.astype(compute_dtype)
    if B_pad != B:
        # Cheap (B x 20) pad; the old full HBM transpose of x is gone.
        x = jnp.pad(x, ((0, B_pad - B), (0, 0)))

    def const(shape):
        # Full-array parameter block; constant index_map -> no per-step re-DMA.
        return pl.BlockSpec(shape, lambda i, s=shape: (0,) * len(s))

    out = pl.pallas_call(
        similarity_nn_kernel,
        out_shape=jax.ShapeDtypeStruct((num_tiles, 1, tile_b), jnp.float32),
        grid_spec=pltpu.PrefetchScalarGridSpec(
            num_scalar_prefetch=0,
            grid=(num_tiles,),
            in_specs=[
                pl.BlockSpec((tile_b, D_IN), lambda i: (i, 0)),   # x streams, natural layout
                const((D_H1, D_IN)), const((D_H1, 1)),            # w1, b1
                const((D_H2, D_H1)), const((D_H2, 1)),            # w2', b2' (BN1 folded)
                const((D_OUT, D_H2)), const((D_OUT, 1)),          # w3', b3' (BN2 folded)
            ],
            out_specs=pl.BlockSpec((1, 1, tile_b), lambda i: (i, 0, 0)),
        ),
        compiler_params=pltpu.CompilerParams(
            dimension_semantics=("parallel",),
            # Explicit scoped-VMEM budget: > v5e's 16 MiB default, < v7x's 64 MiB/TC.
            vmem_limit_bytes=48 * 1024 * 1024,
        ),
    )(x, folded["w1"], folded["b1"], folded["w2"], folded["b2"],
      folded["w3"], folded["b3"])

    return out.reshape(B_pad, 1)[:B]


def init_params(key):
    """Deterministic synthetic parameters (PyTorch shape conventions: W is (out, in))."""
    ks = jax.random.split(key, 12)
    return {
        "w1": jax.random.normal(ks[0], (D_H1, D_IN), jnp.float32) * 0.1,
        "b1": jax.random.normal(ks[1], (D_H1,), jnp.float32) * 0.1,
        "w2": jax.random.normal(ks[2], (D_H2, D_H1), jnp.float32) * 0.1,
        "b2": jax.random.normal(ks[3], (D_H2,), jnp.float32) * 0.1,
        "w3": jax.random.normal(ks[4], (D_OUT, D_H2), jnp.float32) * 0.1,
        "b3": jax.random.normal(ks[5], (D_OUT,), jnp.float32) * 0.1,
        "bn1_gamma": 1.0 + 0.1 * jax.random.normal(ks[6], (D_H1,), jnp.float32),
        "bn1_beta": 0.1 * jax.random.normal(ks[7], (D_H1,), jnp.float32),
        "bn1_mean": 0.1 * jax.random.normal(ks[8], (D_H1,), jnp.float32),
        "bn1_var": jnp.abs(jax.random.normal(ks[9], (D_H1,), jnp.float32)) + 0.5,
        "bn2_gamma": 1.0 + 0.1 * jax.random.normal(ks[10], (D_H2,), jnp.float32),
        "bn2_beta": 0.1 * jax.random.normal(ks[11], (D_H2,), jnp.float32),
        "bn2_mean": jnp.zeros((D_H2,), jnp.float32),
        "bn2_var": jnp.ones((D_H2,), jnp.float32),
    }


def reference_forward(x, p):
    """Pure-JAX reference (eval-mode PyTorch semantics) for correctness check."""
    h = jnp.maximum(x @ p["w1"].T + p["b1"], 0.0)
    h = p["bn1_gamma"] * (h - p["bn1_mean"]) / jnp.sqrt(p["bn1_var"] + BN_EPS) + p["bn1_beta"]
    h = jnp.maximum(h @ p["w2"].T + p["b2"], 0.0)
    h = p["bn2_gamma"] * (h - p["bn2_mean"]) / jnp.sqrt(p["bn2_var"] + BN_EPS) + p["bn2_beta"]
    return jax.nn.sigmoid(h @ p["w3"].T + p["b3"])


if __name__ == "__main__":
    key = jax.random.PRNGKey(0)
    k_x, k_p = jax.random.split(key)

    B = 1000   # -> tile_b=256, 4 grid steps (even; both v7x TensorCores get 2 steps each)
    x = jax.random.normal(k_x, (B, D_IN), jnp.float32)
    params = init_params(k_p)
    ref = reference_forward(x, params)

    fwd = jax.jit(similarity_nn_forward, static_argnames=("tile_b", "compute_dtype"))

    # fp32 path: 1e-5 parity with the eval-mode reference.
    folded = fold_params(params, jnp.float32)
    out = jax.block_until_ready(fwd(x, folded))
    assert out.shape == (B, D_OUT)
    assert jnp.allclose(out, ref, atol=1e-5, rtol=1e-5), "fp32 mismatch vs reference"

    # bf16-operand path (f32 accumulation): half the HBM traffic, relaxed tolerance.
    folded_bf16 = fold_params(params, jnp.bfloat16)
    out_bf16 = jax.block_until_ready(fwd(x, folded_bf16, compute_dtype=jnp.bfloat16))
    assert out_bf16.shape == (B, D_OUT)
    assert jnp.allclose(out_bf16, ref, atol=2e-2, rtol=2e-2), "bf16 mismatch vs reference"

    print("KERNEL_OK")
</pallas_src>

<mosaic_0001>
module attributes {stable_mosaic.version = 11 : i64} {
  func.func @similarity_nn_kernel(%arg0: i32, %arg1: memref<256x20xf32, #tpu.memory_space<vmem>>, %arg2: memref<128x20xf32, #tpu.memory_space<vmem>>, %arg3: memref<128x1xf32, #tpu.memory_space<vmem>>, %arg4: memref<64x128xf32, #tpu.memory_space<vmem>>, %arg5: memref<64x1xf32, #tpu.memory_space<vmem>>, %arg6: memref<1x64xf32, #tpu.memory_space<vmem>>, %arg7: memref<1x1xf32, #tpu.memory_space<vmem>>, %arg8: memref<1x1x256xf32, #tpu.memory_space<vmem>>) attributes {dimension_semantics = [#tpu.dimension_semantics<parallel>], iteration_bounds = array<i64: 4>, scalar_prefetch = 0 : i64, scratch_operands = 0 : i64, tpu.core_type = #tpu.core_type<tc>, window_params = [{transform_indices = @transform_0, window_bounds = array<i64: 256, 20>}, {pipeline_mode = #tpu.pipeline_mode<synchronous>, transform_indices = @transform_1, window_bounds = array<i64: 128, 20>}, {pipeline_mode = #tpu.pipeline_mode<synchronous>, transform_indices = @transform_2, window_bounds = array<i64: 128, 1>}, {pipeline_mode = #tpu.pipeline_mode<synchronous>, transform_indices = @transform_3, window_bounds = array<i64: 64, 128>}, {pipeline_mode = #tpu.pipeline_mode<synchronous>, transform_indices = @transform_4, window_bounds = array<i64: 64, 1>}, {pipeline_mode = #tpu.pipeline_mode<synchronous>, transform_indices = @transform_5, window_bounds = array<i64: 1, 64>}, {pipeline_mode = #tpu.pipeline_mode<synchronous>, transform_indices = @transform_6, window_bounds = array<i64: 1, 1>}, {transform_indices = @transform_7, window_bounds = array<i64: 1, 1, 256>}]} {
    %c0 = arith.constant 0 : index
    %c0_0 = arith.constant 0 : index
    %0 = vector.load %arg1[%c0, %c0_0] : memref<256x20xf32, #tpu.memory_space<vmem>>, vector<256x20xf32>
    %c0_1 = arith.constant 0 : index
    %c0_2 = arith.constant 0 : index
    %1 = vector.load %arg2[%c0_1, %c0_2] : memref<128x20xf32, #tpu.memory_space<vmem>>, vector<128x20xf32>
    %cst = arith.constant dense<0.000000e+00> : vector<128x256xf32>
    %2 = tpu.matmul %1, %0, %cst {dimension_numbers = #tpu.dot_dimension_numbers<[1], [1], [0], [0], [0, 0, 1, 0], [], []>} : vector<128x20xf32>, vector<256x20xf32>, vector<128x256xf32> -> vector<128x256xf32>
    %c0_3 = arith.constant 0 : index
    %c0_4 = arith.constant 0 : index
    %3 = vector.load %arg3[%c0_3, %c0_4] : memref<128x1xf32, #tpu.memory_space<vmem>>, vector<128x1xf32>
    %4 = vector.broadcast %3 : vector<128x1xf32> to vector<128x256xf32>
    %5 = arith.addf %2, %4 : vector<128x256xf32>
    %cst_5 = arith.constant 0.000000e+00 : f32
    %6 = vector.broadcast %cst_5 : f32 to vector<128x256xf32>
    %7 = arith.maximumf %5, %6 : vector<128x256xf32>
    %c0_6 = arith.constant 0 : index
    %c0_7 = arith.constant 0 : index
    %8 = vector.load %arg4[%c0_6, %c0_7] : memref<64x128xf32, #tpu.memory_space<vmem>>, vector<64x128xf32>
    %cst_8 = arith.constant dense<0.000000e+00> : vector<64x256xf32>
    %9 = tpu.matmul %8, %7, %cst_8 {dimension_numbers = #tpu.dot_dimension_numbers<[1], [0], [0], [1], [0, 0, 1, 1], [], []>} : vector<64x128xf32>, vector<128x256xf32>, vector<64x256xf32> -> vector<64x256xf32>
    %c0_9 = arith.constant 0 : index
    %c0_10 = arith.constant 0 : index
    %10 = vector.load %arg5[%c0_9, %c0_10] : memref<64x1xf32, #tpu.memory_space<vmem>>, vector<64x1xf32>
    %11 = vector.broadcast %10 : vector<64x1xf32> to vector<64x256xf32>
    %12 = arith.addf %9, %11 : vector<64x256xf32>
    %cst_11 = arith.constant 0.000000e+00 : f32
    %13 = vector.broadcast %cst_11 : f32 to vector<64x256xf32>
    %14 = arith.maximumf %12, %13 : vector<64x256xf32>
    %c0_12 = arith.constant 0 : index
    %c0_13 = arith.constant 0 : index
    %15 = vector.load %arg6[%c0_12, %c0_13] : memref<1x64xf32, #tpu.memory_space<vmem>>, vector<1x64xf32>
    %cst_14 = arith.constant dense<0.000000e+00> : vector<1x256xf32>
    %16 = tpu.matmul %15, %14, %cst_14 {dimension_numbers = #tpu.dot_dimension_numbers<[1], [0], [0], [1], [0, 0, 1, 1], [], []>} : vector<1x64xf32>, vector<64x256xf32>, vector<1x256xf32> -> vector<1x256xf32>
    %c0_15 = arith.constant 0 : index
    %c0_16 = arith.constant 0 : index
    %17 = vector.load %arg7[%c0_15, %c0_16] : memref<1x1xf32, #tpu.memory_space<vmem>>, vector<1x1xf32>
    %18 = vector.broadcast %17 : vector<1x1xf32> to vector<1x256xf32>
    %19 = arith.addf %16, %18 : vector<1x256xf32>
    %20 = math.absf %19 : vector<1x256xf32>
    %cst_17 = arith.constant 0.000000e+00 : f32
    %21 = vector.broadcast %cst_17 : f32 to vector<1x256xf32>
    %22 = arith.subf %21, %20 : vector<1x256xf32>
    %23 = math.exp %22 : vector<1x256xf32>
    %cst_18 = arith.constant 1.000000e+00 : f32
    %24 = vector.broadcast %cst_18 : f32 to vector<1x256xf32>
    %25 = arith.addf %24, %23 : vector<1x256xf32>
    %cst_19 = arith.constant 1.000000e+00 : f32
    %26 = vector.broadcast %cst_19 : f32 to vector<1x256xf32>
    %27 = arith.divf %26, %25 : vector<1x256xf32>
    %cst_20 = arith.constant 0.000000e+00 : f32
    %28 = vector.broadcast %cst_20 : f32 to vector<1x256xf32>
    %29 = arith.cmpf oge, %19, %28 : vector<1x256xf32>
    %30 = arith.mulf %23, %27 : vector<1x256xf32>
    %31 = arith.select %29, %27, %30 : vector<1x256xi1>, vector<1x256xf32>
    %32 = vector.shape_cast %31 : vector<1x256xf32> to vector<1x1x256xf32>
    %c0_21 = arith.constant 0 : index
    %c0_22 = arith.constant 0 : index
    %c0_23 = arith.constant 0 : index
    %33 = vector.load %arg8[%c0_21, %c0_22, %c0_23] : memref<1x1x256xf32, #tpu.memory_space<vmem>>, vector<1x1x256xf32>
    tpu.vector_store %arg8[%c0_21, %c0_22, %c0_23], %32 {strides = array<i32>} : memref<1x1x256xf32, #tpu.memory_space<vmem>>, vector<1x1x256xf32>,
    return
  }
  func.func @transform_0(%arg0: i32) -> (i32, i32) {
    %c0_i32 = arith.constant 0 : i32
    %c0_i32_0 = arith.constant 0 : i32
    return %arg0, %c0_i32 : i32, i32
  }
  func.func @transform_1(%arg0: i32) -> (i32, i32) {
    %c0_i32 = arith.constant 0 : i32
    %c0_i32_0 = arith.constant 0 : i32
    %c0_i32_1 = arith.constant 0 : i32
    return %c0_i32, %c0_i32_0 : i32, i32
  }
  func.func @transform_2(%arg0: i32) -> (i32, i32) {
    %c0_i32 = arith.constant 0 : i32
    %c0_i32_0 = arith.constant 0 : i32
    %c0_i32_1 = arith.constant 0 : i32
    return %c0_i32, %c0_i32_0 : i32, i32
  }
  func.func @transform_3(%arg0: i32) -> (i32, i32) {
    %c0_i32 = arith.constant 0 : i32
    %c0_i32_0 = arith.constant 0 : i32
    %c0_i32_1 = arith.constant 0 : i32
    return %c0_i32, %c0_i32_0 : i32, i32
  }
  func.func @transform_4(%arg0: i32) -> (i32, i32) {
    %c0_i32 = arith.constant 0 : i32
    %c0_i32_0 = arith.constant 0 : i32
    %c0_i32_1 = arith.constant 0 : i32
    return %c0_i32, %c0_i32_0 : i32, i32
  }
  func.func @transform_5(%arg0: i32) -> (i32, i32) {
    %c0_i32 = arith.constant 0 : i32
    %c0_i32_0 = arith.constant 0 : i32
    %c0_i32_1 = arith.constant 0 : i32
    return %c0_i32, %c0_i32_0 : i32, i32
  }
  func.func @transform_6(%arg0: i32) -> (i32, i32) {
    %c0_i32 = arith.constant 0 : i32
    %c0_i32_0 = arith.constant 0 : i32
    %c0_i32_1 = arith.constant 0 : i32
    return %c0_i32, %c0_i32_0 : i32, i32
  }
  func.func @transform_7(%arg0: i32) -> (i32, i32, i32) {
    %c0_i32 = arith.constant 0 : i32
    %c0_i32_0 = arith.constant 0 : i32
    %c0_i32_1 = arith.constant 0 : i32
    return %arg0, %c0_i32, %c0_i32_0 : i32, i32, i32
  }
}

</mosaic_0001>

<llo_original>
// kernel: similarity_nn_forward.1
$region0: #{similarity_nn_forward.1}
  #allocation0 [shape = 'u32[]', space=smem, size = 0x4, offset = 0x4, fixed_abs, tag = 'smem constant byte address 0x4 - core index']
  #allocation1 [shape = 'u32[72,128]{1,0:T(1,128)}', space=vmem, size = 0x9000, scoped, tag = 'internal scratch']
  #allocation2 [shape = 'f32[1,1]{1,0:T(1,128)S(1)}', space=vmem, size = 0x200, scoped, tag = 'scoped memory for similarity_nn_forward.1']
  %s0 = inlined_call_operand.vmem [shape: f32[1024,20], index: 0, kind: input, shape index: {}]
  %s1 = inlined_call_operand.vmem [shape: f32[128,20], index: 1, kind: input, shape index: {}]
  %s2 = inlined_call_operand.vmem [shape: f32[128,1], index: 2, kind: input, shape index: {}]
  %s3 = inlined_call_operand.vmem [shape: f32[64,128], index: 3, kind: input, shape index: {}]
  %s4 = inlined_call_operand.vmem [shape: f32[64,1], index: 4, kind: input, shape index: {}]
  %s5 = inlined_call_operand.vmem [shape: f32[1,64], index: 5, kind: input, shape index: {}]
  %s6 = inlined_call_operand.<no memory space> [shape: f32[1,1], index: 6, kind: input, shape index: {}]
  %s7 = inlined_call_operand.hbm [shape: f32[4,1,256], index: 7, kind: output, shape index: {}]
  %s8 = sld [smem:[#allocation0]]
  $region61: #{similarity_nn_forward.1} parent=0
    _
  %s10 = ssub.s32 1, %s8
  %s11 = scalar_select 0, %s10, %s8
  %v12 = vstv %s6
  %13 = vst [vmem:[#allocation2] sm:$0x1] %v12
  $region1: #{similarity_nn_forward.1} parent=0
    #allocation3 [shape = 'u8[2048]{0}', space=vmem, size = 0x800, scoped, tag = 'output window, operand 0']
    #allocation4 [shape = 's32[2]{0}', space=sflag, size = 0x8, scoped, tag = 'scoped memory for similarity_nn_forward.1']
    %14 = vsyncpa [#allocation4], 0
    %s15 = scalar_lea.sflag [#allocation4], 1
    %16 = vsyncpa %s15, 0
    loop: start=0, step=1, limit=6
    $region2: #{similarity_nn_forward.1} parent=1 // loop_pre_header
      _
    $region3: #{similarity_nn_forward.1} parent=1 // loop_header
      %s18 = sphi 0, %s22
      %p19 = scmp.ge.s32.totalorder %s18, 6
      %s28 = sphi 0, %s30
      %s31 = sphi 0, %s28
      %s32 = sphi 0, %s31
      %s48 = sphi 0, %s32
      %s52 = sphi 0, %s52
      %s54 = sphi 0, %s52
      %s55 = sphi 0, %s54
      %s69 = sphi 0, %s55
      %s73 = sphi 0, %s73
      %s75 = sphi 0, %s73
      %s76 = sphi 0, %s75
      %s90 = sphi 0, %s76
      %s94 = sphi 0, %s94
      %s96 = sphi 0, %s94
      %s97 = sphi 0, %s96
      %s111 = sphi 0, %s97
      %s115 = sphi 0, %s115
      %s117 = sphi 0, %s115
      %s118 = sphi 0, %s117
      %s132 = sphi 0, %s118
      %s136 = sphi 0, %s136
      %s138 = sphi 0, %s136
      %s139 = sphi 0, %s138
      %s153 = sphi 0, %s139
      %s157 = sphi 0, %s157
      %s159 = sphi 0, %s157
      %s160 = sphi 0, %s159
      %s174 = sphi 0, %s160
      %s180 = sphi 0, %s182
      %s183 = sphi 0, %s180
      %s184 = sphi 0, %s183
      %s200 = sphi 0, %s184
    $region4: #{similarity_nn_forward.1} parent=1 // loop_header_branch
      %21 = sbr.rel (%p19) target = $region8
    $region5: #{similarity_nn_forward.1} parent=1 // loop_body
      %s23 = ssub.s32 %s18, 1
      %s24 = ssub.s32 %s18, 2
      %s25 = sadd.s32 %s18, 1
      %s26 = ssub.s32 %s18, %s25
      %p27 = scmp.eq.s32.totalorder %s26, 0
      %s29 = sadd.s32 %s28, 1
      %s30 = scalar_select %p27, %s28, %s29
      %p33 = pneg %p27
      %p34 = scmp.eq.s32.totalorder %s18, 3
      %p35 = por %p33, %p34
      %p36 = scmp.ne.s32.totalorder %s28, %s31
      %p37 = scmp.eq.s32.totalorder %s18, 0
      %p38 = por %p36, %p37
      %p39 = scmp.ne.s32.totalorder %s28, %s31
      %p40 = scmp.eq.s32.totalorder %s23, 3
      %p41 = por %p39, %p40
      %p42 = scmp.ne.s32.totalorder %s31, %s32
      %p43 = scmp.eq.s32.totalorder %s23, 0
      %p44 = por %p42, %p43
      %p45 = scmp.ne.s32.totalorder %s31, %s32
      %p46 = scmp.eq.s32.totalorder %s24, 3
      %p47 = por %p45, %p46
      %p49 = scmp.ne.s32.totalorder %s32, %s48
      %p50 = scmp.eq.s32.totalorder %s24, 0
      %p51 = por %p49, %p50
      %s53 = sadd.s32 %s52, 1
      %p56 = scmp.eq.s32.totalorder %s18, 3
      %p57 = scmp.ne.s32.totalorder %s52, %s54
      %p58 = scmp.eq.s32.totalorder %s18, 0
      %p59 = por %p57, %p58
      %p60 = scmp.ne.s32.totalorder %s52, %s54
      %p61 = scmp.eq.s32.totalorder %s23, 3
      %p62 = por %p60, %p61
      %p63 = scmp.ne.s32.totalorder %s54, %s55
      %p64 = scmp.eq.s32.totalorder %s23, 0
      %p65 = por %p63, %p64
      %p66 = scmp.ne.s32.totalorder %s54, %s55
      %p67 = scmp.eq.s32.totalorder %s24, 3
      %p68 = por %p66, %p67
      %p70 = scmp.ne.s32.totalorder %s55, %s69
      %p71 = scmp.eq.s32.totalorder %s24, 0
      %p72 = por %p70, %p71
      %s74 = sadd.s32 %s73, 1
      %p77 = scmp.eq.s32.totalorder %s18, 3
      %p78 = scmp.ne.s32.totalorder %s73, %s75
      %p79 = scmp.eq.s32.totalorder %s18, 0
      %p80 = por %p78, %p79
      %p81 = scmp.ne.s32.totalorder %s73, %s75
      %p82 = scmp.eq.s32.totalorder %s23, 3
      %p83 = por %p81, %p82
      %p84 = scmp.ne.s32.totalorder %s75, %s76
      %p85 = scmp.eq.s32.totalorder %s23, 0
      %p86 = por %p84, %p85
      %p87 = scmp.ne.s32.totalorder %s75, %s76
      %p88 = scmp.eq.s32.totalorder %s24, 3
      %p89 = por %p87, %p88
      %p91 = scmp.ne.s32.totalorder %s76, %s90
      %p92 = scmp.eq.s32.totalorder %s24, 0
      %p93 = por %p91, %p92
      %s95 = sadd.s32 %s94, 1
      %p98 = scmp.eq.s32.totalorder %s18, 3
      %p99 = scmp.ne.s32.totalorder %s94, %s96
      %p100 = scmp.eq.s32.totalorder %s18, 0
      %p101 = por %p99, %p100
      %p102 = scmp.ne.s32.totalorder %s94, %s96
      %p103 = scmp.eq.s32.totalorder %s23, 3
      %p104 = por %p102, %p103
      %p105 = scmp.ne.s32.totalorder %s96, %s97
      %p106 = scmp.eq.s32.totalorder %s23, 0
      %p107 = por %p105, %p106
      %p108 = scmp.ne.s32.totalorder %s96, %s97
      %p109 = scmp.eq.s32.totalorder %s24, 3
      %p110 = por %p108, %p109
      %p112 = scmp.ne.s32.totalorder %s97, %s111
      %p113 = scmp.eq.s32.totalorder %s24, 0
      %p114 = por %p112, %p113
      %s116 = sadd.s32 %s115, 1
      %p119 = scmp.eq.s32.totalorder %s18, 3
      %p120 = scmp.ne.s32.totalorder %s115, %s117
      %p121 = scmp.eq.s32.totalorder %s18, 0
      %p122 = por %p120, %p121
      %p123 = scmp.ne.s32.totalorder %s115, %s117
      %p124 = scmp.eq.s32.totalorder %s23, 3
      %p125 = por %p123, %p124
      %p126 = scmp.ne.s32.totalorder %s117, %s118
      %p127 = scmp.eq.s32.totalorder %s23, 0
      %p128 = por %p126, %p127
      %p129 = scmp.ne.s32.totalorder %s117, %s118
      %p130 = scmp.eq.s32.totalorder %s24, 3
      %p131 = por %p129, %p130
      %p133 = scmp.ne.s32.totalorder %s118, %s132
      %p134 = scmp.eq.s32.totalorder %s24, 0
      %p135 = por %p133, %p134
      %s137 = sadd.s32 %s136, 1
      %p140 = scmp.eq.s32.totalorder %s18, 3
      %p141 = scmp.ne.s32.totalorder %s136, %s138
      %p142 = scmp.eq.s32.totalorder %s18, 0
      %p143 = por %p141, %p142
      %p144 = scmp.ne.s32.totalorder %s136, %s138
      %p145 = scmp.eq.s32.totalorder %s23, 3
      %p146 = por %p144, %p145
      %p147 = scmp.ne.s32.totalorder %s138, %s139
      %p148 = scmp.eq.s32.totalorder %s23, 0
      %p149 = por %p147, %p148
      %p150 = scmp.ne.s32.totalorder %s138, %s139
      %p151 = scmp.eq.s32.totalorder %s24, 3
      %p152 = por %p150, %p151
      %p154 = scmp.ne.s32.totalorder %s139, %s153
      %p155 = scmp.eq.s32.totalorder %s24, 0
      %p156 = por %p154, %p155
      %s158 = sadd.s32 %s157, 1
      %p161 = scmp.eq.s32.totalorder %s18, 3
      %p162 = scmp.ne.s32.totalorder %s157, %s159
      %p163 = scmp.eq.s32.totalorder %s18, 0
      %p164 = por %p162, %p163
      %p165 = scmp.ne.s32.totalorder %s157, %s159
      %p166 = scmp.eq.s32.totalorder %s23, 3
      %p167 = por %p165, %p166
      %p168 = scmp.ne.s32.totalorder %s159, %s160
      %p169 = scmp.eq.s32.totalorder %s23, 0
      %p170 = por %p168, %p169
      %p171 = scmp.ne.s32.totalorder %s159, %s160
      %p172 = scmp.eq.s32.totalorder %s24, 3
      %p173 = por %p171, %p172
      %p175 = scmp.ne.s32.totalorder %s160, %s174
      %p176 = scmp.eq.s32.totalorder %s24, 0
      %p177 = por %p175, %p176
      %s178 = ssub.s32 %s18, %s25
      %p179 = scmp.eq.s32.totalorder %s178, 0
      %s181 = sadd.s32 %s180, 1
      %s182 = scalar_select %p179, %s180, %s181
      %p185 = pneg %p179
      %p186 = scmp.eq.s32.totalorder %s18, 3
      %p187 = por %p185, %p186
      %p188 = scmp.ne.s32.totalorder %s180, %s183
      %p189 = scmp.eq.s32.totalorder %s18, 0
      %p190 = por %p188, %p189
      %p191 = scmp.ne.s32.totalorder %s180, %s183
      %p192 = scmp.eq.s32.totalorder %s23, 3
      %p193 = por %p191, %p192
      %p194 = scmp.ne.s32.totalorder %s183, %s184
      %p195 = scmp.eq.s32.totalorder %s23, 0
      %p196 = por %p194, %p195
      %p197 = scmp.ne.s32.totalorder %s183, %s184
      %p198 = scmp.eq.s32.totalorder %s24, 3
      %p199 = por %p197, %p198
      %p201 = scmp.ne.s32.totalorder %s184, %s200
      %p202 = scmp.eq.s32.totalorder %s24, 0
      %p203 = por %p201, %p202
      %p204 = scmp.le.s32.totalorder 1, %s18
      %p205 = scmp.lt.s32.totalorder %s18, 5
      %p206 = pnand %p204, %p205
      %p207 = pneg %p206
      // Predicated region
      $region9: #{similarity_nn_forward.1} parent=5 // pred_check
        _
      $region10: #{similarity_nn_forward.1} parent=5 // pred_check_branch
        %209 = sbr.rel (%p206) target = $region12
      $region11: #{similarity_nn_forward.1} parent=5 // pred_region
        %s210 = ssub.s32 %s18, 1
        // Predicated region
        $region13: #{similarity_nn_forward.1} parent=11 // pred_check
          %p211 = pneg %p65
        $region14: #{similarity_nn_forward.1} parent=11 // pred_check_branch
          %213 = sbr.rel (%p211) target = $region16
        $region15: #{similarity_nn_forward.1} parent=11 // pred_region
          _
        $region16: #{similarity_nn_forward.1} parent=11 // pred_fallthru
          _
        // Predicated region
        $region17: #{similarity_nn_forward.1} parent=11 // pred_check
          %p214 = pneg %p86
        $region18: #{similarity_nn_forward.1} parent=11 // pred_check_branch
          %216 = sbr.rel (%p214) target = $region20
        $region19: #{similarity_nn_forward.1} parent=11 // pred_region
          _
        $region20: #{similarity_nn_forward.1} parent=11 // pred_fallthru
          _
        // Predicated region
        $region21: #{similarity_nn_forward.1} parent=11 // pred_check
          %p217 = pneg %p107
        $region22: #{similarity_nn_forward.1} parent=11 // pred_check_branch
          %219 = sbr.rel (%p217) target = $region24
        $region23: #{similarity_nn_forward.1} parent=11 // pred_region
          _
        $region24: #{similarity_nn_forward.1} parent=11 // pred_fallthru
          _
        // Predicated region
        $region25: #{similarity_nn_forward.1} parent=11 // pred_check
          %p220 = pneg %p128
        $region26: #{similarity_nn_forward.1} parent=11 // pred_check_branch
          %222 = sbr.rel (%p220) target = $region28
        $region27: #{similarity_nn_forward.1} parent=11 // pred_region
          _
        $region28: #{similarity_nn_forward.1} parent=11 // pred_fallthru
          _
        // Predicated region
        $region29: #{similarity_nn_forward.1} parent=11 // pred_check
          %p223 = pneg %p149
        $region30: #{similarity_nn_forward.1} parent=11 // pred_check_branch
          %225 = sbr.rel (%p223) target = $region32
        $region31: #{similarity_nn_forward.1} parent=11 // pred_region
          _
        $region32: #{similarity_nn_forward.1} parent=11 // pred_fallthru
          _
        // Predicated region
        $region33: #{similarity_nn_forward.1} parent=11 // pred_check
          %p226 = pneg %p170
        $region34: #{similarity_nn_forward.1} parent=11 // pred_check_branch
          %228 = sbr.rel (%p226) target = $region36
        $region35: #{similarity_nn_forward.1} parent=11 // pred_region
          _
        $region36: #{similarity_nn_forward.1} parent=11 // pred_fallthru
          _
      $region12: #{similarity_nn_forward.1} parent=5 // pred_fallthru
        _
      %p229 = scmp.lt.s32.totalorder %s18, 4
      // Predicated region
      $region37: #{similarity_nn_forward.1} parent=5 // pred_check
        %p230 = pneg %p229
      $region38: #{similarity_nn_forward.1} parent=5 // pred_check_branch
        %232 = sbr.rel (%p230) target = $region40
      $region39: #{similarity_nn_forward.1} parent=5 // pred_region
        // Predicated region
        $region41: #{similarity_nn_forward.1} parent=39 // pred_check
          %p233 = pneg %p38
        $region42: #{similarity_nn_forward.1} parent=39 // pred_check_branch
          %235 = sbr.rel (%p233) target = $region44
        $region43: #{similarity_nn_forward.1} parent=39 // pred_region
          %s236 = smul.u32 32, %s18
          %p237 = scmp.lt.s32.totalorder %s236, 127
          %s238 = scalar_select %p237, %s236, 127
          %s239 = smul.addr %s238, 8
          %s240 = scalar_lea.vmem %s0, %s239
          %s241 = smul.u32 32, %s18
        $region44: #{similarity_nn_forward.1} parent=39 // pred_fallthru
          _
      $region40: #{similarity_nn_forward.1} parent=5 // pred_fallthru
        _
      %p242 = scmp.le.s32.totalorder 1, %s18
      %p243 = scmp.lt.s32.totalorder %s18, 5
      %p244 = pnand %p242, %p243
      %p245 = pneg %p244
      // Predicated region
      $region45: #{similarity_nn_forward.1} parent=5 // pred_check
        _
      $region46: #{similarity_nn_forward.1} parent=5 // pred_check_branch
        %247 = sbr.rel (%p244) target = $region48
      $region47: #{similarity_nn_forward.1} parent=5 // pred_region
        %s248 = ssub.s32 %s18, 1
        %s249 = smul.u32 32, %s23
        %p250 = scmp.lt.s32.totalorder %s249, 127
        %s251 = scalar_select %p250, %s249, 127
        %s252 = smul.addr %s251, 8
        %s253 = scalar_lea.vmem %s0, %s252
        %p254 = pneg %p44
        %p255 = pneg %p41
        %p256 = pneg %p65
        %p257 = pneg %p62
        %p258 = pneg %p86
        %p259 = pneg %p83
        %p260 = pneg %p107
        %p261 = pneg %p104
        %p262 = pneg %p128
        %p263 = pneg %p125
        %p264 = pneg %p149
        %p265 = pneg %p146
        %p266 = pneg %p170
        %p267 = pneg %p167
        %p268 = pneg %p196
        %p269 = pneg %p193
        %s270 = sand.u32 %s183, 1
        %s271 = scalar_lea.sflag [#allocation4], %s270
        %s272 = sand.u32 %s183, 1
        %s273 = smul.addr %s272, 2
        %s274 = scalar_lea.vmem [#allocation3], %s273
        %s275 = smul.u32 32, %s23
        %p276 = scmp.lt.s32.totalorder %s275, 127
        %s277 = scalar_select %p276, %s275, 127
        %s278 = smul.addr %s277, 8
        %s279 = scalar_lea.vmem %s0, %s278
        %s280 = smul.u32 32, %s23
        %v281 = vld [vmem:[%s279] sm:$0xff]
        %v282 = vld [vmem:[%s279 + $0x8] sm:$0xff]
        %v283 = vld [vmem:[%s279 + $0x10] sm:$0xff]
        %v284 = vld [vmem:[%s279 + $0x18] sm:$0xff]
        %v285 = vld [vmem:[%s279 + $0x20] sm:$0xff]
        %v286 = vld [vmem:[%s279 + $0x28] sm:$0xff]
        %v287 = vld [vmem:[%s279 + $0x30] sm:$0xff]
        %v288 = vld [vmem:[%s279 + $0x38] sm:$0xff]
        %v289 = vld [vmem:[%s279 + $0x40] sm:$0xff]
        %v290 = vld [vmem:[%s279 + $0x48] sm:$0xff]
        %v291 = vld [vmem:[%s279 + $0x50] sm:$0xff]
        %v292 = vld [vmem:[%s279 + $0x58] sm:$0xff]
        %v293 = vld [vmem:[%s279 + $0x60] sm:$0xff]
        %v294 = vld [vmem:[%s279 + $0x68] sm:$0xff]
        %v295 = vld [vmem:[%s279 + $0x70] sm:$0xff]
        %v296 = vld [vmem:[%s279 + $0x78] sm:$0xff]
        %v297 = vld [vmem:[%s279 + $0x80] sm:$0xff]
        %v298 = vld [vmem:[%s279 + $0x88] sm:$0xff]
        %v299 = vld [vmem:[%s279 + $0x90] sm:$0xff]
        %v300 = vld [vmem:[%s279 + $0x98] sm:$0xff]
        %v301 = vld [vmem:[%s279 + $0xa0] sm:$0xff]
        %v302 = vld [vmem:[%s279 + $0xa8] sm:$0xff]
        %v303 = vld [vmem:[%s279 + $0xb0] sm:$0xff]
        %v304 = vld [vmem:[%s279 + $0xb8] sm:$0xff]
        %v305 = vld [vmem:[%s279 + $0xc0] sm:$0xff]
        %v306 = vld [vmem:[%s279 + $0xc8] sm:$0xff]
        %v307 = vld [vmem:[%s279 + $0xd0] sm:$0xff]
        %v308 = vld [vmem:[%s279 + $0xd8] sm:$0xff]
        %v309 = vld [vmem:[%s279 + $0xe0] sm:$0xff]
        %v310 = vld [vmem:[%s279 + $0xe8] sm:$0xff]
        %v311 = vld [vmem:[%s279 + $0xf0] sm:$0xff]
        %v312 = vld [vmem:[%s279 + $0xf8] sm:$0xff]
        %v313 = vld [vmem:[%s1] sm:$0xff]
        %v314 = vld [vmem:[%s1 + $0x8] sm:$0xff]
        %v315 = vld [vmem:[%s1 + $0x10] sm:$0xff]
        %v316 = vld [vmem:[%s1 + $0x18] sm:$0xff]
        %v317 = vld [vmem:[%s1 + $0x20] sm:$0xff]
        %v318 = vld [vmem:[%s1 + $0x28] sm:$0xff]
        %v319 = vld [vmem:[%s1 + $0x30] sm:$0xff]
        %v320 = vld [vmem:[%s1 + $0x38] sm:$0xff]
        %v321 = vld [vmem:[%s1 + $0x40] sm:$0xff]
        %v322 = vld [vmem:[%s1 + $0x48] sm:$0xff]
        %v323 = vld [vmem:[%s1 + $0x50] sm:$0xff]
        %v324 = vld [vmem:[%s1 + $0x58] sm:$0xff]
        %v325 = vld [vmem:[%s1 + $0x60] sm:$0xff]
        %v326 = vld [vmem:[%s1 + $0x68] sm:$0xff]
        %v327 = vld [vmem:[%s1 + $0x70] sm:$0xff]
        %v328 = vld [vmem:[%s1 + $0x78] sm:$0xff]
        %v329 = vld [vmem:[%s2] sm:$0xff]
        %v330 = vld [vmem:[%s2 + $0x8] sm:$0xff]
        %v331 = vld [vmem:[%s2 + $0x10] sm:$0xff]
        %v332 = vld [vmem:[%s2 + $0x18] sm:$0xff]
        %v333 = vld [vmem:[%s2 + $0x20] sm:$0xff]
        %v334 = vld [vmem:[%s2 + $0x28] sm:$0xff]
        %v335 = vld [vmem:[%s2 + $0x30] sm:$0xff]
        %v336 = vld [vmem:[%s2 + $0x38] sm:$0xff]
        %v337 = vld [vmem:[%s2 + $0x40] sm:$0xff]
        %v338 = vld [vmem:[%s2 + $0x48] sm:$0xff]
        %v339 = vld [vmem:[%s2 + $0x50] sm:$0xff]
        %v340 = vld [vmem:[%s2 + $0x58] sm:$0xff]
        %v341 = vld [vmem:[%s2 + $0x60] sm:$0xff]
        %v342 = vld [vmem:[%s2 + $0x68] sm:$0xff]
        %v343 = vld [vmem:[%s2 + $0x70] sm:$0xff]
        %v344 = vld [vmem:[%s2 + $0x78] sm:$0xff]
        %346 = vset.pattern.permute.xlu0 0
        %347 = vperm.xlu0 %346, %v329
        %v348 = vpop.permute.xlu0 %347
        %351 = vset.pattern.permute.xlu0 0
        %352 = vperm.xlu0 %351, %v330
        %v353 = vpop.permute.xlu0 %352
        %356 = vset.pattern.permute.xlu0 0
        %357 = vperm.xlu0 %356, %v331
        %v358 = vpop.permute.xlu0 %357
        %361 = vset.pattern.permute.xlu0 0
        %362 = vperm.xlu0 %361, %v332
        %v363 = vpop.permute.xlu0 %362
        %366 = vset.pattern.permute.xlu0 0
        %367 = vperm.xlu0 %366, %v333
        %v368 = vpop.permute.xlu0 %367
        %371 = vset.pattern.permute.xlu0 0
        %372 = vperm.xlu0 %371, %v334
        %v373 = vpop.permute.xlu0 %372
        %376 = vset.pattern.permute.xlu0 0
        %377 = vperm.xlu0 %376, %v335
        %v378 = vpop.permute.xlu0 %377
        %381 = vset.pattern.permute.xlu0 0
        %382 = vperm.xlu0 %381, %v336
        %v383 = vpop.permute.xlu0 %382
        %386 = vset.pattern.permute.xlu0 0
        %387 = vperm.xlu0 %386, %v337
        %v388 = vpop.permute.xlu0 %387
        %391 = vset.pattern.permute.xlu0 0
        %392 = vperm.xlu0 %391, %v338
        %v393 = vpop.permute.xlu0 %392
        %396 = vset.pattern.permute.xlu0 0
        %397 = vperm.xlu0 %396, %v339
        %v398 = vpop.permute.xlu0 %397
        %401 = vset.pattern.permute.xlu0 0
        %402 = vperm.xlu0 %401, %v340
        %v403 = vpop.permute.xlu0 %402
        %406 = vset.pattern.permute.xlu0 0
        %407 = vperm.xlu0 %406, %v341
        %v408 = vpop.permute.xlu0 %407
        %411 = vset.pattern.permute.xlu0 0
        %412 = vperm.xlu0 %411, %v342
        %v413 = vpop.permute.xlu0 %412
        %416 = vset.pattern.permute.xlu0 0
        %417 = vperm.xlu0 %416, %v343
        %v418 = vpop.permute.xlu0 %417
        %421 = vset.pattern.permute.xlu0 0
        %422 = vperm.xlu0 %421, %v344
        %v423 = vpop.permute.xlu0 %422
        %vm425 = vcmask 162816
        %v427 = vsel %vm425, %v313, 0
        %v430 = vsel %vm425, %v314, 0
        %v433 = vsel %vm425, %v315, 0
        %v436 = vsel %vm425, %v316, 0
        %v439 = vsel %vm425, %v317, 0
        %v442 = vsel %vm425, %v318, 0
        %v445 = vsel %vm425, %v319, 0
        %v448 = vsel %vm425, %v320, 0
        %v451 = vsel %vm425, %v321, 0
        %v454 = vsel %vm425, %v322, 0
        %v457 = vsel %vm425, %v323, 0
        %v460 = vsel %vm425, %v324, 0
        %v463 = vsel %vm425, %v325, 0
        %v466 = vsel %vm425, %v326, 0
        %v469 = vsel %vm425, %v327, 0
        %v472 = vsel %vm425, %v328, 0
        %v475 = vsel %vm425, %v281, 0
        %v478 = vsel %vm425, %v282, 0
        %v481 = vsel %vm425, %v283, 0
        %v484 = vsel %vm425, %v284, 0
        %v487 = vsel %vm425, %v285, 0
        %v490 = vsel %vm425, %v286, 0
        %v493 = vsel %vm425, %v287, 0
        %v496 = vsel %vm425, %v288, 0
        %v499 = vsel %vm425, %v289, 0
        %v502 = vsel %vm425, %v290, 0
        %v505 = vsel %vm425, %v291, 0
        %v508 = vsel %vm425, %v292, 0
        %v511 = vsel %vm425, %v293, 0
        %v514 = vsel %vm425, %v294, 0
        %v517 = vsel %vm425, %v295, 0
        %v520 = vsel %vm425, %v296, 0
        %v523 = vsel %vm425, %v297, 0
        %v526 = vsel %vm425, %v298, 0
        %v529 = vsel %vm425, %v299, 0
        %v532 = vsel %vm425, %v300, 0
        %v535 = vsel %vm425, %v301, 0
        %v538 = vsel %vm425, %v302, 0
        %v541 = vsel %vm425, %v303, 0
        %v544 = vsel %vm425, %v304, 0
        %v547 = vsel %vm425, %v305, 0
        %v550 = vsel %vm425, %v306, 0
        %v553 = vsel %vm425, %v307, 0
        %v556 = vsel %vm425, %v308, 0
        %v559 = vsel %vm425, %v309, 0
        %v562 = vsel %vm425, %v310, 0
        %v565 = vsel %vm425, %v311, 0
        %v568 = vsel %vm425, %v312, 0
        %570 = vmatpush.xpose.msra.mxu0 %v520
        %571 = vmatpush.xpose.msra.mxu0 %v517
        %572 = vmatpush.xpose.msra.mxu0 %v514
        %573 = vmatpush.xpose.msra.mxu0 %v511
        %574 = vmatpush.xpose.msra.mxu0 %v508
        %575 = vmatpush.xpose.msra.mxu0 %v505
        %576 = vmatpush.xpose.msra.mxu0 %v502
        %577 = vmatpush.xpose.msra.mxu0 %v499
        %578 = vmatpush.xpose.msra.mxu0 %v496
        %579 = vmatpush.xpose.msra.mxu0 %v493
        %580 = vmatpush.xpose.msra.mxu0 %v490
        %581 = vmatpush.xpose.msra.mxu0 %v487
        %582 = vmatpush.xpose.msra.mxu0 %v484
        %583 = vmatpush.xpose.msra.mxu0 %v481
        %584 = vmatpush.xpose.msra.mxu0 %v478
        %585 = vmatpush.xpose.msra.mxu0 %v475
        %586 = vmatmul.f32.gmra.mxu0 %v427
        %v587 = vpop.f32.mrf.mxu0
        %v588 = vadd.f32 %v348, %v587
        %589 = vmatmul.f32.gmra.mxu0 %v430
        %v590 = vpop.f32.mrf.mxu0
        %v591 = vadd.f32 %v353, %v590
        %592 = vmatmul.f32.gmra.mxu0 %v433
        %v593 = vpop.f32.mrf.mxu0
        %v594 = vadd.f32 %v358, %v593
        %595 = vmatmul.f32.gmra.mxu0 %v436
        %v596 = vpop.f32.mrf.mxu0
        %v597 = vadd.f32 %v363, %v596
        %598 = vmatmul.f32.gmra.mxu0 %v439
        %v599 = vpop.f32.mrf.mxu0
        %v600 = vadd.f32 %v368, %v599
        %601 = vmatmul.f32.gmra.mxu0 %v442
        %v602 = vpop.f32.mrf.mxu0
        %v603 = vadd.f32 %v373, %v602
        %604 = vmatmul.f32.gmra.mxu0 %v445
        %v605 = vpop.f32.mrf.mxu0
        %v606 = vadd.f32 %v378, %v605
        %607 = vmatmul.f32.gmra.mxu0 %v448
        %v608 = vpop.f32.mrf.mxu0
        %v609 = vadd.f32 %v383, %v608
        %610 = vmatmul.f32.gmra.mxu0 %v451
        %v611 = vpop.f32.mrf.mxu0
        %v612 = vadd.f32 %v388, %v611
        %613 = vmatmul.f32.gmra.mxu0 %v454
        %v614 = vpop.f32.mrf.mxu0
        %v615 = vadd.f32 %v393, %v614
        %616 = vmatmul.f32.gmra.mxu0 %v457
        %v617 = vpop.f32.mrf.mxu0
        %v618 = vadd.f32 %v398, %v617
        %619 = vmatmul.f32.gmra.mxu0 %v460
        %v620 = vpop.f32.mrf.mxu0
        %v621 = vadd.f32 %v403, %v620
        %622 = vmatmul.f32.gmra.mxu0 %v463
        %v623 = vpop.f32.mrf.mxu0
        %v624 = vadd.f32 %v408, %v623
        %625 = vmatmul.f32.gmra.mxu0 %v466
        %v626 = vpop.f32.mrf.mxu0
        %v627 = vadd.f32 %v413, %v626
        %628 = vmatmul.f32.gmra.mxu0 %v469
        %v629 = vpop.f32.mrf.mxu0
        %v630 = vadd.f32 %v418, %v629
        %631 = vmatmul.f32.gmra.mxu0 %v472
        %v632 = vpop.f32.mrf.mxu0
        %v633 = vadd.f32 %v423, %v632
        %634 = vdwg.mxu0
        %635 = vmatpush.xpose.msra.mxu0 %v568
        %636 = vmatpush.xpose.msra.mxu0 %v565
        %637 = vmatpush.xpose.msra.mxu0 %v562
        %638 = vmatpush.xpose.msra.mxu0 %v559
        %639 = vmatpush.xpose.msra.mxu0 %v556
        %640 = vmatpush.xpose.msra.mxu0 %v553
        %641 = vmatpush.xpose.msra.mxu0 %v550
        %642 = vmatpush.xpose.msra.mxu0 %v547
        %643 = vmatpush.xpose.msra.mxu0 %v544
        %644 = vmatpush.xpose.msra.mxu0 %v541
        %645 = vmatpush.xpose.msra.mxu0 %v538
        %646 = vmatpush.xpose.msra.mxu0 %v535
        %647 = vmatpush.xpose.msra.mxu0 %v532
        %648 = vmatpush.xpose.msra.mxu0 %v529
        %649 = vmatpush.xpose.msra.mxu0 %v526
        %650 = vmatpush.xpose.msra.mxu0 %v523
        %651 = vmatmul.f32.gmra.mxu0 %v427
        %v652 = vpop.f32.mrf.mxu0
        %v653 = vadd.f32 %v348, %v652
        %654 = vmatmul.f32.gmra.mxu0 %v430
        %v655 = vpop.f32.mrf.mxu0
        %v656 = vadd.f32 %v353, %v655
        %657 = vmatmul.f32.gmra.mxu0 %v433
        %v658 = vpop.f32.mrf.mxu0
        %v659 = vadd.f32 %v358, %v658
        %660 = vmatmul.f32.gmra.mxu0 %v436
        %v661 = vpop.f32.mrf.mxu0
        %v662 = vadd.f32 %v363, %v661
        %663 = vmatmul.f32.gmra.mxu0 %v439
        %v664 = vpop.f32.mrf.mxu0
        %v665 = vadd.f32 %v368, %v664
        %666 = vmatmul.f32.gmra.mxu0 %v442
        %v667 = vpop.f32.mrf.mxu0
        %v668 = vadd.f32 %v373, %v667
        %669 = vmatmul.f32.gmra.mxu0 %v445
        %v670 = vpop.f32.mrf.mxu0
        %v671 = vadd.f32 %v378, %v670
        %672 = vmatmul.f32.gmra.mxu0 %v448
        %v673 = vpop.f32.mrf.mxu0
        %v674 = vadd.f32 %v383, %v673
        %675 = vmatmul.f32.gmra.mxu0 %v451
        %v676 = vpop.f32.mrf.mxu0
        %v677 = vadd.f32 %v388, %v676
        %678 = vmatmul.f32.gmra.mxu0 %v454
        %v679 = vpop.f32.mrf.mxu0
        %v680 = vadd.f32 %v393, %v679
        %681 = vmatmul.f32.gmra.mxu0 %v457
        %v682 = vpop.f32.mrf.mxu0
        %v683 = vadd.f32 %v398, %v682
        %684 = vmatmul.f32.gmra.mxu0 %v460
        %v685 = vpop.f32.mrf.mxu0
        %v686 = vadd.f32 %v403, %v685
        %687 = vmatmul.f32.gmra.mxu0 %v463
        %v688 = vpop.f32.mrf.mxu0
        %v689 = vadd.f32 %v408, %v688
        %690 = vmatmul.f32.gmra.mxu0 %v466
        %v691 = vpop.f32.mrf.mxu0
        %v692 = vadd.f32 %v413, %v691
        %693 = vmatmul.f32.gmra.mxu0 %v469
        %v694 = vpop.f32.mrf.mxu0
        %v695 = vadd.f32 %v418, %v694
        %696 = vmatmul.f32.gmra.mxu0 %v472
        %v697 = vpop.f32.mrf.mxu0
        %v698 = vadd.f32 %v423, %v697
        %699 = vdwg.mxu0
        %v700 = vmax.f32 %v588, 0.0
        %v701 = vmax.f32 %v653, 0.0
        %v702 = vmax.f32 %v591, 0.0
        %v703 = vmax.f32 %v656, 0.0
        %v704 = vmax.f32 %v594, 0.0
        %v705 = vmax.f32 %v659, 0.0
        %v706 = vmax.f32 %v597, 0.0
        %v707 = vmax.f32 %v662, 0.0
        %v708 = vmax.f32 %v600, 0.0
        %v709 = vmax.f32 %v665, 0.0
        %v710 = vmax.f32 %v603, 0.0
        %v711 = vmax.f32 %v668, 0.0
        %v712 = vmax.f32 %v606, 0.0
        %v713 = vmax.f32 %v671, 0.0
        %v714 = vmax.f32 %v609, 0.0
        %v715 = vmax.f32 %v674, 0.0
        %v716 = vmax.f32 %v612, 0.0
        %v717 = vmax.f32 %v677, 0.0
        %v718 = vmax.f32 %v615, 0.0
        %v719 = vmax.f32 %v680, 0.0
        %v720 = vmax.f32 %v618, 0.0
        %v721 = vmax.f32 %v683, 0.0
        %v722 = vmax.f32 %v621, 0.0
        %v723 = vmax.f32 %v686, 0.0
        %v724 = vmax.f32 %v624, 0.0
        %v725 = vmax.f32 %v689, 0.0
        %v726 = vmax.f32 %v627, 0.0
        %v727 = vmax.f32 %v692, 0.0
        %v728 = vmax.f32 %v630, 0.0
        %v729 = vmax.f32 %v695, 0.0
        %v730 = vmax.f32 %v633, 0.0
        %v731 = vmax.f32 %v698, 0.0
        %v732 = vld [vmem:[%s3] sm:$0xff]
        %v733 = vld [vmem:[%s3 + $0x8] sm:$0xff]
        %v734 = vld [vmem:[%s3 + $0x10] sm:$0xff]
        %v735 = vld [vmem:[%s3 + $0x18] sm:$0xff]
        %v736 = vld [vmem:[%s3 + $0x20] sm:$0xff]
        %v737 = vld [vmem:[%s3 + $0x28] sm:$0xff]
        %v738 = vld [vmem:[%s3 + $0x30] sm:$0xff]
        %v739 = vld [vmem:[%s3 + $0x38] sm:$0xff]
        %v740 = vld [vmem:[%s4] sm:$0xff]
        %v741 = vld [vmem:[%s4 + $0x8] sm:$0xff]
        %v742 = vld [vmem:[%s4 + $0x10] sm:$0xff]
        %v743 = vld [vmem:[%s4 + $0x18] sm:$0xff]
        %v744 = vld [vmem:[%s4 + $0x20] sm:$0xff]
        %v745 = vld [vmem:[%s4 + $0x28] sm:$0xff]
        %v746 = vld [vmem:[%s4 + $0x30] sm:$0xff]
        %v747 = vld [vmem:[%s4 + $0x38] sm:$0xff]
        %749 = vset.pattern.permute.xlu0 0
        %750 = vperm.xlu0 %749, %v740
        %v751 = vpop.permute.xlu0 %750
        %754 = vset.pattern.permute.xlu0 0
        %755 = vperm.xlu0 %754, %v741
        %v756 = vpop.permute.xlu0 %755
        %759 = vset.pattern.permute.xlu0 0
        %760 = vperm.xlu0 %759, %v742
        %v761 = vpop.permute.xlu0 %760
        %764 = vset.pattern.permute.xlu0 0
        %765 = vperm.xlu0 %764, %v743
        %v766 = vpop.permute.xlu0 %765
        %769 = vset.pattern.permute.xlu0 0
        %770 = vperm.xlu0 %769, %v744
        %v771 = vpop.permute.xlu0 %770
        %774 = vset.pattern.permute.xlu0 0
        %775 = vperm.xlu0 %774, %v745
        %v776 = vpop.permute.xlu0 %775
        %779 = vset.pattern.permute.xlu0 0
        %780 = vperm.xlu0 %779, %v746
        %v781 = vpop.permute.xlu0 %780
        %784 = vset.pattern.permute.xlu0 0
        %785 = vperm.xlu0 %784, %v747
        %v786 = vpop.permute.xlu0 %785
        %788 = vmatpush.msra.mxu0 %v730
        %789 = vmatpush.msra.mxu0 %v728
        %790 = vmatpush.msra.mxu0 %v726
        %791 = vmatpush.msra.mxu0 %v724
        %792 = vmatpush.msra.mxu0 %v722
        %793 = vmatpush.msra.mxu0 %v720
        %794 = vmatpush.msra.mxu0 %v718
        %795 = vmatpush.msra.mxu0 %v716
        %796 = vmatpush.msra.mxu0 %v714
        %797 = vmatpush.msra.mxu0 %v712
        %798 = vmatpush.msra.mxu0 %v710
        %799 = vmatpush.msra.mxu0 %v708
        %800 = vmatpush.msra.mxu0 %v706
        %801 = vmatpush.msra.mxu0 %v704
        %802 = vmatpush.msra.mxu0 %v702
        %803 = vmatpush.msra.mxu0 %v700
        %804 = vmatmul.f32.gmra.mxu0 %v732
        %v805 = vpop.f32.mrf.mxu0
        %v806 = vadd.f32 %v751, %v805
        %807 = vmatmul.f32.gmra.mxu0 %v733
        %v808 = vpop.f32.mrf.mxu0
        %v809 = vadd.f32 %v756, %v808
        %810 = vmatmul.f32.gmra.mxu0 %v734
        %v811 = vpop.f32.mrf.mxu0
        %v812 = vadd.f32 %v761, %v811
        %813 = vmatmul.f32.gmra.mxu0 %v735
        %v814 = vpop.f32.mrf.mxu0
        %v815 = vadd.f32 %v766, %v814
        %816 = vmatmul.f32.gmra.mxu0 %v736
        %v817 = vpop.f32.mrf.mxu0
        %v818 = vadd.f32 %v771, %v817
        %819 = vmatmul.f32.gmra.mxu0 %v737
        %v820 = vpop.f32.mrf.mxu0
        %v821 = vadd.f32 %v776, %v820
        %822 = vmatmul.f32.gmra.mxu0 %v738
        %v823 = vpop.f32.mrf.mxu0
        %v824 = vadd.f32 %v781, %v823
        %825 = vmatmul.f32.gmra.mxu0 %v739
        %v826 = vpop.f32.mrf.mxu0
        %v827 = vadd.f32 %v786, %v826
        %828 = vdwg.mxu0
        %829 = vmatpush.msra.mxu0 %v731
        %830 = vmatpush.msra.mxu0 %v729
        %831 = vmatpush.msra.mxu0 %v727
        %832 = vmatpush.msra.mxu0 %v725
        %833 = vmatpush.msra.mxu0 %v723
        %834 = vmatpush.msra.mxu0 %v721
        %835 = vmatpush.msra.mxu0 %v719
        %836 = vmatpush.msra.mxu0 %v717
        %837 = vmatpush.msra.mxu0 %v715
        %838 = vmatpush.msra.mxu0 %v713
        %839 = vmatpush.msra.mxu0 %v711
        %840 = vmatpush.msra.mxu0 %v709
        %841 = vmatpush.msra.mxu0 %v707
        %842 = vmatpush.msra.mxu0 %v705
        %843 = vmatpush.msra.mxu0 %v703
        %844 = vmatpush.msra.mxu0 %v701
        %845 = vmatmul.f32.gmra.mxu0 %v732
        %v846 = vpop.f32.mrf.mxu0
        %v847 = vadd.f32 %v751, %v846
        %848 = vmatmul.f32.gmra.mxu0 %v733
        %v849 = vpop.f32.mrf.mxu0
        %v850 = vadd.f32 %v756, %v849
        %851 = vmatmul.f32.gmra.mxu0 %v734
        %v852 = vpop.f32.mrf.mxu0
        %v853 = vadd.f32 %v761, %v852
        %854 = vmatmul.f32.gmra.mxu0 %v735
        %v855 = vpop.f32.mrf.mxu0
        %v856 = vadd.f32 %v766, %v855
        %857 = vmatmul.f32.gmra.mxu0 %v736
        %v858 = vpop.f32.mrf.mxu0
        %v859 = vadd.f32 %v771, %v858
        %860 = vmatmul.f32.gmra.mxu0 %v737
        %v861 = vpop.f32.mrf.mxu0
        %v862 = vadd.f32 %v776, %v861
        %863 = vmatmul.f32.gmra.mxu0 %v738
        %v864 = vpop.f32.mrf.mxu0
        %v865 = vadd.f32 %v781, %v864
        %866 = vmatmul.f32.gmra.mxu0 %v739
        %v867 = vpop.f32.mrf.mxu0
        %v868 = vadd.f32 %v786, %v867
        %869 = vdwg.mxu0
        %v870 = vmax.f32 %v806, 0.0
        %v871 = vmax.f32 %v847, 0.0
        %v872 = vmax.f32 %v809, 0.0
        %v873 = vmax.f32 %v850, 0.0
        %v874 = vmax.f32 %v812, 0.0
        %v875 = vmax.f32 %v853, 0.0
        %v876 = vmax.f32 %v815, 0.0
        %v877 = vmax.f32 %v856, 0.0
        %v878 = vmax.f32 %v818, 0.0
        %v879 = vmax.f32 %v859, 0.0
        %v880 = vmax.f32 %v821, 0.0
        %v881 = vmax.f32 %v862, 0.0
        %v882 = vmax.f32 %v824, 0.0
        %v883 = vmax.f32 %v865, 0.0
        %v884 = vmax.f32 %v827, 0.0
        %v885 = vmax.f32 %v868, 0.0
        %v886 = vld [vmem:[%s5] sm:$0x1]
        %v887 = vld [vmem:[#allocation2] sm:$0x1]
        %889 = vset.pattern.permute.xlu0 0
        %890 = vperm.xlu0 %889, %v887
        %v891 = vpop.permute.xlu0 %890
        %v893 = vperm.slane %v891, 0
        %vm894 = vcmask 523264
        %v896 = vsel %vm894, %v886, 0
        %898 = vmatpush.msra.mxu0 0.0
        %899 = vmatpush.msra.mxu0 0.0
        %900 = vmatpush.msra.mxu0 0.0
        %901 = vmatpush.msra.mxu0 0.0
        %902 = vmatpush.msra.mxu0 0.0
        %903 = vmatpush.msra.mxu0 0.0
        %904 = vmatpush.msra.mxu0 0.0
        %905 = vmatpush.msra.mxu0 0.0
        %906 = vmatpush.msra.mxu0 %v884
        %907 = vmatpush.msra.mxu0 %v882
        %908 = vmatpush.msra.mxu0 %v880
        %909 = vmatpush.msra.mxu0 %v878
        %910 = vmatpush.msra.mxu0 %v876
        %911 = vmatpush.msra.mxu0 %v874
        %912 = vmatpush.msra.mxu0 %v872
        %913 = vmatpush.msra.mxu0 %v870
        %914 = vmatmul.f32.gmra.mxu0 %v896
        %v915 = vpop.f32.mrf.mxu0
        %v916 = vadd.f32 %v893, %v915
        %917 = vdwg.mxu0
        %918 = vmatpush.msra.mxu0 0.0
        %919 = vmatpush.msra.mxu0 0.0
        %920 = vmatpush.msra.mxu0 0.0
        %921 = vmatpush.msra.mxu0 0.0
        %922 = vmatpush.msra.mxu0 0.0
        %923 = vmatpush.msra.mxu0 0.0
        %924 = vmatpush.msra.mxu0 0.0
        %925 = vmatpush.msra.mxu0 0.0
        %926 = vmatpush.msra.mxu0 %v885
        %927 = vmatpush.msra.mxu0 %v883
        %928 = vmatpush.msra.mxu0 %v881
        %929 = vmatpush.msra.mxu0 %v879
        %930 = vmatpush.msra.mxu0 %v877
        %931 = vmatpush.msra.mxu0 %v875
        %932 = vmatpush.msra.mxu0 %v873
        %933 = vmatpush.msra.mxu0 %v871
        %934 = vmatmul.f32.gmra.mxu0 %v896
        %v935 = vpop.f32.mrf.mxu0
        %v936 = vadd.f32 %v893, %v935
        %937 = vdwg.mxu0
        %v938 = vand.u32 2147483647, %v916
        %v939 = vand.u32 2147483647, %v936
        %v940 = vsub.f32 0.0, %v938
        %v941 = vsub.f32 0.0, %v939
        %v942 = vmul.f32 %v940, 1.442695
        %v943 = vpow.pop %v942
        %v944 = vmul.f32 %v941, 1.442695
        %v945 = vpow.pop %v944
        %v946 = vadd.f32 %v943, 1.0
        %v947 = vadd.f32 %v945, 1.0
        %v948 = vrcp.pop %v946
        %v949 = vmul.f32 %v946, %v948
        %v950 = vsub.f32 1.0, %v949
        %v951 = vmul.f32 %v948, %v950
        %v952 = vadd.f32 %v948, %v951
        %vm953 = vweird.f32 %v946
        %vm954 = vweird.f32 %v948
        %vm955 = vmor %vm953, %vm954
        %v956 = vsel %vm955, %v948, %v952
        %v957 = vand.u32 2147483647, %v946
        %vm958 = vcmp.eq.f32.partialorder %v957, 8.507059e+37
        %v959 = vand.u32 %v946, 2147483648
        %v960 = vor.u32 1.1754944e-38, %v959
        %v961 = vsel %vm958, %v960, %v956
        %v962 = vmul.f32 1.0, %v961
        %v963 = vrcp.pop %v947
        %v964 = vmul.f32 %v947, %v963
        %v965 = vsub.f32 1.0, %v964
        %v966 = vmul.f32 %v963, %v965
        %v967 = vadd.f32 %v963, %v966
        %vm968 = vweird.f32 %v947
        %vm969 = vweird.f32 %v963
        %vm970 = vmor %vm968, %vm969
        %v971 = vsel %vm970, %v963, %v967
        %v972 = vand.u32 2147483647, %v947
        %vm973 = vcmp.eq.f32.partialorder %v972, 8.507059e+37
        %v974 = vand.u32 %v947, 2147483648
        %v975 = vor.u32 1.1754944e-38, %v974
        %v976 = vsel %vm973, %v975, %v971
        %v977 = vmul.f32 1.0, %v976
        %vm978 = vcmp.ge.f32.partialorder %v916, 0.0
        %vm979 = vcmp.ge.f32.partialorder %v936, 0.0
        %v980 = vmul.f32 %v943, %v962
        %v981 = vmul.f32 %v945, %v977
        %v982 = vsel %vm978, %v962, %v980
        %v983 = vsel %vm979, %v977, %v981
        %v986 = vrot.slane %v983, 7
        %vm987 = vcmask 1040384
        %v988 = vsel %vm987, %v982, %v986
        %v990 = vlaneseq
        %vm991 = vcmp.ge.s32.totalorder %v990, 0
        %vm992 = vcmp.lt.s32.totalorder %v990, 256
        %vm993 = vmand %vm991, %vm992
        %994 = vst.msk [vmem:[%s274] sm:$0x3] %vm993, %v988
        %s995 = sand.u32 %s183, 1
        %s996 = scalar_lea.sflag [#allocation4], %s995
        %s997 = sand.u32 %s183, 1
        %s998 = smul.addr %s997, 2
        %s999 = scalar_lea.vmem [#allocation3], %s998
        // Predicated region
        $region49: #{similarity_nn_forward.1} parent=47 // pred_check
          %p1000 = pneg %p193
        $region50: #{similarity_nn_forward.1} parent=47 // pred_check_branch
          %1002 = sbr.rel (%p1000) target = $region52
        $region51: #{similarity_nn_forward.1} parent=47 // pred_region
          %1004 = vsyncadd %s996, 0
          %s1005 = smul.addr %s23, 2
          %s1006 = scalar_lea.hbm %s7, %s1005
          %s1008 = sshll.u32 %s999, 4
          %s1009 = int_to_ptr.vmem [resolvable:$true] %s1008
          %s1010 = sshll.u32 %s1006, 4
          %s1011 = int_to_ptr.hbm [resolvable:$true] %s1010
          %1013 = dma.vmem_to_hbm [thread:$0]  %s1009, 32, %s1011, %s996
        $region52: #{similarity_nn_forward.1} parent=47 // pred_fallthru
          _
      $region48: #{similarity_nn_forward.1} parent=5 // pred_fallthru
        _
      %p1014 = scmp.le.s32.totalorder 2, %s18
      // Predicated region
      $region53: #{similarity_nn_forward.1} parent=5 // pred_check
        %p1015 = pneg %p1014
      $region54: #{similarity_nn_forward.1} parent=5 // pred_check_branch
        %1017 = sbr.rel (%p1015) target = $region56
      $region55: #{similarity_nn_forward.1} parent=5 // pred_region
        %s1018 = ssub.s32 %s18, 2
        // Predicated region
        $region57: #{similarity_nn_forward.1} parent=55 // pred_check
          %p1019 = pneg %p199
        $region58: #{similarity_nn_forward.1} parent=55 // pred_check_branch
          %1021 = sbr.rel (%p1019) target = $region60
        $region59: #{similarity_nn_forward.1} parent=55 // pred_region
          %s1022 = sand.u32 %s184, 1
          %s1023 = scalar_lea.sflag [#allocation4], %s1022
          %s1024 = sand.u32 %s184, 1
          %s1025 = smul.addr %s1024, 2
          %s1026 = scalar_lea.vmem [#allocation3], %s1025
          %1028 = dma.done %s1023, 32
        $region60: #{similarity_nn_forward.1} parent=55 // pred_fallthru
          _
      $region56: #{similarity_nn_forward.1} parent=5 // pred_fallthru
        _
    $region6: #{similarity_nn_forward.1} parent=1 // loop_footer
      %s22 = sadd.s32 1, %s18
    $region7: #{similarity_nn_forward.1} parent=1 // loop_footer_branch
      %17 = sbr.rel target = $region3
    $region8: #{similarity_nn_forward.1} parent=1 // loop_exit
      _
    %1029 = vsyncpa [#allocation4], 1
    %s1030 = scalar_lea.sflag [#allocation4], 1
    %1031 = vsyncpa %s1030, 1

</llo_original>
